<compile_context>
chip_gen: v5e
topology: v5e:2x2
jax: 0.10.0
libtpu: 0.0.40
codegen_flags: <defaults>
</compile_context>

<pallas_src>
import jax
import jax.numpy as jnp
from jax.experimental import pallas as pl
from jax.experimental.pallas import tpu as pltpu

BN_EPS = 1e-5
LANE = 128            # pad stored feature dims to this -> lane-dense stores
ROW_ALIGN = 16        # bf16 packs 16 rows per sublane group


def _round_up(x, m):
    return (x + m - 1) // m * m


def _full_spec(shape):
    # Whole-array block resident in VMEM (no grid; fused kernel, small shapes).
    ndim = len(shape)
    return pl.BlockSpec(shape, lambda: (0,) * ndim)


def _pad2d(arr, rows, cols):
    r, c = arr.shape
    return jnp.pad(arr, ((0, rows - r), (0, cols - c)))


# ---------------------------------------------------------------------------
# Fused kernel (all layers in one pallas_call)
# ---------------------------------------------------------------------------
def _make_fused_kernel(num_layers, true_dims):
    """true_dims[i] = (F_in, F_out) of layer i BEFORE lane padding."""

    def kernel(*refs):
        # refs = (a, x, w0, b0, w1, b1, ..., w_{L-1}, b_{L-1}, out)
        a_ref, x_ref = refs[0], refs[1]
        o_ref = refs[-1]
        wb = refs[2:-1]

        a = a_ref[...]                       # (Np, Np) bf16 — loaded once
        h = x_ref[...]                       # (Np, F0) bf16
        for i in range(num_layers):
            w = wb[2 * i][...]               # bf16 (F_in_i, F_out_pad) (BN folded)
            b = wb[2 * i + 1][...]           # f32  (1, F_out_pad)      (BN folded)
            f_in_t, f_out_t = true_dims[i]
            if f_in_t <= f_out_t:
                # aggregate first: (A @ H) @ W — contraction over the smaller dim
                ah = jnp.dot(a, h, preferred_element_type=jnp.float32)
                y = jnp.dot(ah.astype(jnp.bfloat16), w,
                            preferred_element_type=jnp.float32) + b
            else:
                # transform first: A @ (H @ W)
                hw = jnp.dot(h, w, preferred_element_type=jnp.float32)
                y = jnp.dot(a, hw.astype(jnp.bfloat16),
                            preferred_element_type=jnp.float32) + b
            if i < num_layers - 1:
                # eval BN already folded into (w, b); dropout(eval) = identity
                h = jnp.maximum(y, 0.0).astype(jnp.bfloat16)
            else:
                o_ref[...] = y               # f32, lane-dense (last dim % 128 == 0)

    return kernel


# ---------------------------------------------------------------------------
# Wrapper: BN folding, lane padding, bf16 cast, single pallas_call
# ---------------------------------------------------------------------------
def _fold_and_pad(x, a_norm, params):
    convs = params["convs"]
    bns = params["bns"]
    num_layers = len(convs)
    n, f0 = x.shape
    n_pad = _round_up(n, ROW_ALIGN)

    a_p = _pad2d(a_norm, n_pad, n_pad).astype(jnp.bfloat16)
    x_p = _pad2d(x, n_pad, f0).astype(jnp.bfloat16)      # keep true F0 columns

    flat_wb = []
    true_dims = []
    for i, (w, b) in enumerate(convs):
        f_in, f_out = w.shape
        true_dims.append((f_in, f_out))
        if i < num_layers - 1:
            gamma, beta, mean, var = bns[i]
            scale = gamma * jax.lax.rsqrt(var + BN_EPS)   # (1, f_out), f32
            w = w * scale                                 # fold BN into conv
            b = (b - mean) * scale + beta
        f_in_pad = f0 if i == 0 else _round_up(f_in, LANE)
        f_out_pad = _round_up(f_out, LANE)
        flat_wb.append(_pad2d(w, f_in_pad, f_out_pad).astype(jnp.bfloat16))
        flat_wb.append(_pad2d(b, 1, f_out_pad))           # bias stays f32
    return a_p, x_p, flat_wb, tuple(true_dims), n_pad


def _cost_estimate(n_pad, x_cols, flat_wb, true_dims, out_bytes):
    flops = 0
    h_cols = x_cols
    for i, (f_in_t, f_out_t) in enumerate(true_dims):
        f_out_pad = flat_wb[2 * i].shape[1]
        if f_in_t <= f_out_t:
            flops += 2 * n_pad * n_pad * h_cols + 2 * n_pad * h_cols * f_out_pad
        else:
            flops += 2 * n_pad * h_cols * f_out_pad + 2 * n_pad * n_pad * f_out_pad
        h_cols = f_out_pad
    bytes_accessed = out_bytes
    bytes_accessed += sum(int(a.size) * a.dtype.itemsize for a in flat_wb)
    bytes_accessed += 2 * n_pad * n_pad + 2 * n_pad * x_cols  # bf16 A and X
    return pl.CostEstimate(flops=int(flops), transcendentals=0,
                           bytes_accessed=int(bytes_accessed))


@jax.jit
def gcn_forward(x, a_norm, params):
    """params: dict 'convs' = [(W, b), ...], 'bns' = [(gamma, beta, mean, var), ...]."""
    n, _ = x.shape
    num_classes = params["convs"][-1][0].shape[1]

    a_p, x_p, flat_wb, true_dims, n_pad = _fold_and_pad(x, a_norm, params)
    num_layers = len(true_dims)
    c_pad = flat_wb[-1].shape[1]

    in_arrays = [a_p, x_p] + flat_wb
    in_specs = [_full_spec(arr.shape) for arr in in_arrays]
    out_bytes = n_pad * c_pad * 4

    kernel = _make_fused_kernel(num_layers, true_dims)
    out_pad = pl.pallas_call(
        kernel,
        out_shape=jax.ShapeDtypeStruct((n_pad, c_pad), jnp.float32),
        in_specs=in_specs,
        out_specs=_full_spec((n_pad, c_pad)),
        cost_estimate=_cost_estimate(n_pad, x_p.shape[1], flat_wb, true_dims,
                                     out_bytes),
        compiler_params=pltpu.CompilerParams(vmem_limit_bytes=32 * 1024 * 1024),
    )(*in_arrays)
    return out_pad[:n, :num_classes]


# ---------------------------------------------------------------------------
# Graph / parameter construction (plain JAX glue)
# ---------------------------------------------------------------------------
def build_normalized_adjacency(edge_index, num_nodes):
    """Dense D^{-1/2} (A + I) D^{-1/2} following PyG gcn_norm (edge_weight=1).

    Duplicate edges accumulate (scatter-add), matching PyG behaviour.
    """
    src, dst = edge_index[0], edge_index[1]
    a = jnp.zeros((num_nodes, num_nodes), jnp.float32)
    a = a.at[dst, src].add(1.0)               # A[i, j] += 1 for each edge j -> i
    a_hat = a + jnp.eye(num_nodes, dtype=jnp.float32)
    deg = jnp.sum(a_hat, axis=1)              # in-degree incl. self loop
    dinv = jnp.where(deg > 0, jax.lax.rsqrt(deg), 0.0)
    return a_hat * dinv[:, None] * dinv[None, :]


def init_params(key, num_features, hidden_channels, out_channels, num_layers):
    dims = [num_features] + [hidden_channels] * (num_layers - 1) + [out_channels]
    convs, bns = [], []
    for i in range(num_layers):
        f_in, f_out = dims[i], dims[i + 1]
        key, kw, kg, kb, km, kv = jax.random.split(key, 6)
        scale = 1.0 / jnp.sqrt(jnp.float32(f_in))
        w = jax.random.uniform(kw, (f_in, f_out), jnp.float32, -scale, scale)
        b = jnp.zeros((1, f_out), jnp.float32)
        convs.append((w, b))
        if i < num_layers - 1:
            gamma = 1.0 + 0.1 * jax.random.normal(kg, (1, f_out), jnp.float32)
            beta = 0.1 * jax.random.normal(kb, (1, f_out), jnp.float32)
            mean = 0.1 * jax.random.normal(km, (1, f_out), jnp.float32)
            var = jnp.abs(1.0 + 0.1 * jax.random.normal(kv, (1, f_out), jnp.float32))
            bns.append((gamma, beta, mean, var))
    return {"convs": convs, "bns": bns}


if __name__ == "__main__":
    # Small shapes consistent with the module: num_layers=3, hidden=32.
    N = 32           # nodes in the sampled mini-batch
    NUM_FEATURES = 16
    HIDDEN = 32
    NUM_CLASSES = 8
    NUM_LAYERS = 3
    NUM_EDGES = 96

    key = jax.random.PRNGKey(0)
    kx, ke, kp = jax.random.split(key, 3)

    x = jax.random.normal(kx, (N, NUM_FEATURES), jnp.float32)
    edge_index = jax.random.randint(ke, (2, NUM_EDGES), 0, N, dtype=jnp.int32)
    a_norm = build_normalized_adjacency(edge_index, N)
    params = init_params(kp, NUM_FEATURES, HIDDEN, NUM_CLASSES, NUM_LAYERS)

    out = gcn_forward(x, a_norm, params)
    jax.block_until_ready(out)
    assert out.shape == (N, NUM_CLASSES)
    print("KERNEL_OK")
</pallas_src>

<mosaic_0001>
module attributes {stable_mosaic.version = 11 : i64} {
  func.func @kernel(%arg0: memref<32x32xbf16, #tpu.memory_space<vmem>>, %arg1: memref<32x16xbf16, #tpu.memory_space<vmem>>, %arg2: memref<16x128xbf16, #tpu.memory_space<vmem>>, %arg3: memref<1x128xf32, #tpu.memory_space<vmem>>, %arg4: memref<128x128xbf16, #tpu.memory_space<vmem>>, %arg5: memref<1x128xf32, #tpu.memory_space<vmem>>, %arg6: memref<128x128xbf16, #tpu.memory_space<vmem>>, %arg7: memref<1x128xf32, #tpu.memory_space<vmem>>, %arg8: memref<32x128xf32, #tpu.memory_space<vmem>>) attributes {dimension_semantics = [], scalar_prefetch = 0 : i64, scratch_operands = 0 : i64, tpu.core_type = #tpu.core_type<tc>} {
    %c0 = arith.constant 0 : index
    %c0_0 = arith.constant 0 : index
    %0 = vector.load %arg0[%c0, %c0_0] : memref<32x32xbf16, #tpu.memory_space<vmem>>, vector<32x32xbf16>
    %c0_1 = arith.constant 0 : index
    %c0_2 = arith.constant 0 : index
    %1 = vector.load %arg1[%c0_1, %c0_2] : memref<32x16xbf16, #tpu.memory_space<vmem>>, vector<32x16xbf16>
    %c0_3 = arith.constant 0 : index
    %c0_4 = arith.constant 0 : index
    %2 = vector.load %arg2[%c0_3, %c0_4] : memref<16x128xbf16, #tpu.memory_space<vmem>>, vector<16x128xbf16>
    %c0_5 = arith.constant 0 : index
    %c0_6 = arith.constant 0 : index
    %3 = vector.load %arg3[%c0_5, %c0_6] : memref<1x128xf32, #tpu.memory_space<vmem>>, vector<1x128xf32>
    %cst = arith.constant dense<0.000000e+00> : vector<32x16xf32>
    %4 = tpu.matmul %0, %1, %cst {dimension_numbers = #tpu.dot_dimension_numbers<[1], [0], [0], [1], [0, 0, 1, 1], [], []>} : vector<32x32xbf16>, vector<32x16xbf16>, vector<32x16xf32> -> vector<32x16xf32>
    %5 = arith.truncf %4 : vector<32x16xf32> to vector<32x16xbf16>
    %cst_7 = arith.constant dense<0.000000e+00> : vector<32x128xf32>
    %6 = tpu.matmul %5, %2, %cst_7 {dimension_numbers = #tpu.dot_dimension_numbers<[1], [0], [0], [1], [0, 0, 1, 1], [], []>} : vector<32x16xbf16>, vector<16x128xbf16>, vector<32x128xf32> -> vector<32x128xf32>
    %7 = vector.broadcast %3 : vector<1x128xf32> to vector<32x128xf32>
    %8 = arith.addf %6, %7 : vector<32x128xf32>
    %cst_8 = arith.constant 0.000000e+00 : f32
    %9 = vector.broadcast %cst_8 : f32 to vector<32x128xf32>
    %10 = arith.maximumf %8, %9 : vector<32x128xf32>
    %11 = arith.truncf %10 : vector<32x128xf32> to vector<32x128xbf16>
    %c0_9 = arith.constant 0 : index
    %c0_10 = arith.constant 0 : index
    %12 = vector.load %arg4[%c0_9, %c0_10] : memref<128x128xbf16, #tpu.memory_space<vmem>>, vector<128x128xbf16>
    %c0_11 = arith.constant 0 : index
    %c0_12 = arith.constant 0 : index
    %13 = vector.load %arg5[%c0_11, %c0_12] : memref<1x128xf32, #tpu.memory_space<vmem>>, vector<1x128xf32>
    %cst_13 = arith.constant dense<0.000000e+00> : vector<32x128xf32>
    %14 = tpu.matmul %0, %11, %cst_13 {dimension_numbers = #tpu.dot_dimension_numbers<[1], [0], [0], [1], [0, 0, 1, 1], [], []>} : vector<32x32xbf16>, vector<32x128xbf16>, vector<32x128xf32> -> vector<32x128xf32>
    %15 = arith.truncf %14 : vector<32x128xf32> to vector<32x128xbf16>
    %cst_14 = arith.constant dense<0.000000e+00> : vector<32x128xf32>
    %16 = tpu.matmul %15, %12, %cst_14 {dimension_numbers = #tpu.dot_dimension_numbers<[1], [0], [0], [1], [0, 0, 1, 1], [], []>} : vector<32x128xbf16>, vector<128x128xbf16>, vector<32x128xf32> -> vector<32x128xf32>
    %17 = vector.broadcast %13 : vector<1x128xf32> to vector<32x128xf32>
    %18 = arith.addf %16, %17 : vector<32x128xf32>
    %cst_15 = arith.constant 0.000000e+00 : f32
    %19 = vector.broadcast %cst_15 : f32 to vector<32x128xf32>
    %20 = arith.maximumf %18, %19 : vector<32x128xf32>
    %21 = arith.truncf %20 : vector<32x128xf32> to vector<32x128xbf16>
    %c0_16 = arith.constant 0 : index
    %c0_17 = arith.constant 0 : index
    %22 = vector.load %arg6[%c0_16, %c0_17] : memref<128x128xbf16, #tpu.memory_space<vmem>>, vector<128x128xbf16>
    %c0_18 = arith.constant 0 : index
    %c0_19 = arith.constant 0 : index
    %23 = vector.load %arg7[%c0_18, %c0_19] : memref<1x128xf32, #tpu.memory_space<vmem>>, vector<1x128xf32>
    %cst_20 = arith.constant dense<0.000000e+00> : vector<32x128xf32>
    %24 = tpu.matmul %21, %22, %cst_20 {dimension_numbers = #tpu.dot_dimension_numbers<[1], [0], [0], [1], [0, 0, 1, 1], [], []>} : vector<32x128xbf16>, vector<128x128xbf16>, vector<32x128xf32> -> vector<32x128xf32>
    %25 = arith.truncf %24 : vector<32x128xf32> to vector<32x128xbf16>
    %cst_21 = arith.constant dense<0.000000e+00> : vector<32x128xf32>
    %26 = tpu.matmul %0, %25, %cst_21 {dimension_numbers = #tpu.dot_dimension_numbers<[1], [0], [0], [1], [0, 0, 1, 1], [], []>} : vector<32x32xbf16>, vector<32x128xbf16>, vector<32x128xf32> -> vector<32x128xf32>
    %27 = vector.broadcast %23 : vector<1x128xf32> to vector<32x128xf32>
    %28 = arith.addf %26, %27 : vector<32x128xf32>
    %c0_22 = arith.constant 0 : index
    %c0_23 = arith.constant 0 : index
    %29 = vector.load %arg8[%c0_22, %c0_23] : memref<32x128xf32, #tpu.memory_space<vmem>>, vector<32x128xf32>
    tpu.vector_store %arg8[%c0_22, %c0_23], %28 {strides = array<i32>} : memref<32x128xf32, #tpu.memory_space<vmem>>, vector<32x128xf32>,
    return
  }
}

</mosaic_0001>

<llo_original>
// kernel: gcn_forward.1
$region0: #{gcn_forward.1}
  #allocation0 [shape = 'u32[]', space=smem, size = 0x4, offset = 0x4, fixed_abs, tag = 'smem constant byte address 0x4 - core index']
  #allocation1 [shape = 'u32[72,128]{1,0:T(1,128)}', space=vmem, size = 0x9000, scoped, tag = 'internal scratch']
  %s0 = inlined_call_operand.vmem [shape: bf16[32,32], index: 0, kind: input, shape index: {}]
  %s1 = inlined_call_operand.vmem [shape: bf16[32,16], index: 1, kind: input, shape index: {}]
  %s2 = inlined_call_operand.vmem [shape: bf16[16,128], index: 2, kind: input, shape index: {}]
  %s3 = inlined_call_operand.vmem [shape: f32[1,128], index: 3, kind: input, shape index: {}]
  %s4 = inlined_call_operand.vmem [shape: bf16[128,128], index: 4, kind: input, shape index: {}]
  %s5 = inlined_call_operand.vmem [shape: f32[1,128], index: 5, kind: input, shape index: {}]
  %s6 = inlined_call_operand.vmem [shape: bf16[128,128], index: 6, kind: input, shape index: {}]
  %s7 = inlined_call_operand.vmem [shape: f32[1,128], index: 7, kind: input, shape index: {}]
  %s8 = inlined_call_operand.vmem [shape: f32[32,128], index: 8, kind: output, shape index: {}]
  %s9 = sld [smem:[#allocation0]]
  $region42: #{gcn_forward.1} parent=0
    _
  %s11 = ssub.s32 1, %s9
  %s12 = scalar_select 0, %s11, %s9
  // Predicated region
  $region2: #{gcn_forward.1} parent=0 // pred_check
    _
  $region3: #{gcn_forward.1} parent=0 // pred_check_branch
    %14 = sbr.rel (0) target = $region5
  $region4: #{gcn_forward.1} parent=0 // pred_region
    _
  $region5: #{gcn_forward.1} parent=0 // pred_fallthru
    _
  // Predicated region
  $region6: #{gcn_forward.1} parent=0 // pred_check
    _
  $region7: #{gcn_forward.1} parent=0 // pred_check_branch
    %16 = sbr.rel (0) target = $region9
  $region8: #{gcn_forward.1} parent=0 // pred_region
    _
  $region9: #{gcn_forward.1} parent=0 // pred_fallthru
    _
  // Predicated region
  $region10: #{gcn_forward.1} parent=0 // pred_check
    _
  $region11: #{gcn_forward.1} parent=0 // pred_check_branch
    %18 = sbr.rel (0) target = $region13
  $region12: #{gcn_forward.1} parent=0 // pred_region
    _
  $region13: #{gcn_forward.1} parent=0 // pred_fallthru
    _
  // Predicated region
  $region14: #{gcn_forward.1} parent=0 // pred_check
    _
  $region15: #{gcn_forward.1} parent=0 // pred_check_branch
    %20 = sbr.rel (0) target = $region17
  $region16: #{gcn_forward.1} parent=0 // pred_region
    _
  $region17: #{gcn_forward.1} parent=0 // pred_fallthru
    _
  // Predicated region
  $region18: #{gcn_forward.1} parent=0 // pred_check
    _
  $region19: #{gcn_forward.1} parent=0 // pred_check_branch
    %22 = sbr.rel (0) target = $region21
  $region20: #{gcn_forward.1} parent=0 // pred_region
    _
  $region21: #{gcn_forward.1} parent=0 // pred_fallthru
    _
  // Predicated region
  $region22: #{gcn_forward.1} parent=0 // pred_check
    _
  $region23: #{gcn_forward.1} parent=0 // pred_check_branch
    %24 = sbr.rel (0) target = $region25
  $region24: #{gcn_forward.1} parent=0 // pred_region
    _
  $region25: #{gcn_forward.1} parent=0 // pred_fallthru
    _
  // Predicated region
  $region26: #{gcn_forward.1} parent=0 // pred_check
    _
  $region27: #{gcn_forward.1} parent=0 // pred_check_branch
    %26 = sbr.rel (0) target = $region29
  $region28: #{gcn_forward.1} parent=0 // pred_region
    _
  $region29: #{gcn_forward.1} parent=0 // pred_fallthru
    _
  // Predicated region
  $region30: #{gcn_forward.1} parent=0 // pred_check
    _
  $region31: #{gcn_forward.1} parent=0 // pred_check_branch
    %28 = sbr.rel (0) target = $region33
  $region32: #{gcn_forward.1} parent=0 // pred_region
    _
  $region33: #{gcn_forward.1} parent=0 // pred_fallthru
    _
  %v30 = vld [vmem:[%s0] sm:$0xf]
  %v31 = vld [vmem:[%s0 + $0x4] sm:$0xf]
  %v32 = vld [vmem:[%s0 + $0x8] sm:$0xf]
  %v33 = vld [vmem:[%s0 + $0xc] sm:$0xf]
  %v34 = vld [vmem:[%s1] sm:$0xf]
  %v35 = vld [vmem:[%s1 + $0x4] sm:$0xf]
  %v36 = vld [vmem:[%s1 + $0x8] sm:$0xf]
  %v37 = vld [vmem:[%s1 + $0xc] sm:$0xf]
  %v38 = vld [vmem:[%s2] sm:$0xf]
  %v39 = vld [vmem:[%s2 + $0x4] sm:$0xf]
  %v40 = vld [vmem:[%s3] sm:$0x1]
  %v45 = vunpack.c.l.b16 %v30
  %v46 = vunpack.c.l.b16 %v31
  %v47 = vunpack.c.l.b16 %v32
  %v48 = vunpack.c.l.b16 %v33
  %v49 = vpack.c.b16 %v46, %v45
  %v50 = vpack.c.b16 %v48, %v47
  %v55 = vunpack.c.l.b16 %v34
  %v56 = vunpack.c.l.b16 %v35
  %v57 = vunpack.c.l.b16 %v36
  %v58 = vunpack.c.l.b16 %v37
  %v59 = vpack.c.b16 %v56, %v55
  %v60 = vpack.c.b16 %v58, %v57
  %vm63 = vcmask 261120
  %v65 = vsel %vm63, %v49, 0
  %v68 = vsel %vm63, %v50, 0
  %70 = vmatpush.bf16.msra.mxu0 0
  %71 = vmatpush.bf16.msra.mxu0 0
  %72 = vmatpush.bf16.msra.mxu0 0
  %73 = vmatpush.bf16.msra.mxu0 0
  %74 = vmatpush.bf16.msra.mxu0 0
  %75 = vmatpush.bf16.msra.mxu0 0
  %76 = vmatpush.bf16.msra.mxu0 %v60
  %77 = vmatpush.bf16.msra.mxu0 %v59
  %78 = vmatmul.bf16.gmra.mxu0 %v65
  %v79 = vpop.f32.mrf.mxu0
  %v80 = vadd.f32 0.0, %v79
  %v81 = vpop.f32.mrf.mxu0
  %v82 = vadd.f32 0.0, %v81
  %83 = vmatmul.bf16.gmra.mxu0 %v68
  %v84 = vpop.f32.mrf.mxu0
  %v85 = vadd.f32 0.0, %v84
  %v86 = vpop.f32.mrf.mxu0
  %v87 = vadd.f32 0.0, %v86
  %88 = vdwg.mxu0
  %v89 = vpack.c.bf16 %v82, %v80
  %v90 = vpack.c.bf16 %v87, %v85
  %v92 = vperm.slane %v40, 0
  %v96 = vunpack.c.l.b16 %v38
  %v97 = vunpack.c.l.b16 %v39
  %v98 = vpack.c.b16 %v97, %v96
  %vm100 = vcmask 130048
  %v102 = vsel %vm100, %v89, 0
  %v105 = vsel %vm100, %v90, 0
  %107 = vmatpush.bf16.msra.mxu0 0
  %108 = vmatpush.bf16.msra.mxu0 0
  %109 = vmatpush.bf16.msra.mxu0 0
  %110 = vmatpush.bf16.msra.mxu0 0
  %111 = vmatpush.bf16.msra.mxu0 0
  %112 = vmatpush.bf16.msra.mxu0 0
  %113 = vmatpush.bf16.msra.mxu0 0
  %114 = vmatpush.bf16.msra.mxu0 %v98
  %115 = vmatmul.bf16.gmra.mxu0 %v102
  %v116 = vpop.f32.mrf.mxu0
  %v117 = vadd.f32 %v92, %v116
  %v118 = vpop.f32.mrf.mxu0
  %v119 = vadd.f32 %v92, %v118
  %120 = vmatmul.bf16.gmra.mxu0 %v105
  %v121 = vpop.f32.mrf.mxu0
  %v122 = vadd.f32 %v92, %v121
  %v123 = vpop.f32.mrf.mxu0
  %v124 = vadd.f32 %v92, %v123
  %125 = vdwg.mxu0
  %v126 = vmax.f32 %v117, 0.0
  %v127 = vmax.f32 %v119, 0.0
  %v128 = vmax.f32 %v122, 0.0
  %v129 = vmax.f32 %v124, 0.0
  %v130 = vpack.c.bf16 %v127, %v126
  %v131 = vpack.c.bf16 %v129, %v128
  %v132 = vld [vmem:[%s4] sm:$0xf]
  %v133 = vld [vmem:[%s4 + $0x4] sm:$0xf]
  %v134 = vld [vmem:[%s4 + $0x8] sm:$0xf]
  %v135 = vld [vmem:[%s4 + $0xc] sm:$0xf]
  %v136 = vld [vmem:[%s4 + $0x10] sm:$0xf]
  %v137 = vld [vmem:[%s4 + $0x14] sm:$0xf]
  %v138 = vld [vmem:[%s4 + $0x18] sm:$0xf]
  %v139 = vld [vmem:[%s4 + $0x1c] sm:$0xf]
  %v140 = vld [vmem:[%s4 + $0x20] sm:$0xf]
  %v141 = vld [vmem:[%s4 + $0x24] sm:$0xf]
  %v142 = vld [vmem:[%s4 + $0x28] sm:$0xf]
  %v143 = vld [vmem:[%s4 + $0x2c] sm:$0xf]
  %v144 = vld [vmem:[%s4 + $0x30] sm:$0xf]
  %v145 = vld [vmem:[%s4 + $0x34] sm:$0xf]
  %v146 = vld [vmem:[%s4 + $0x38] sm:$0xf]
  %v147 = vld [vmem:[%s4 + $0x3c] sm:$0xf]
  %v148 = vld [vmem:[%s5] sm:$0x1]
  %149 = vmatpush.bf16.msra.mxu0 0
  %150 = vmatpush.bf16.msra.mxu0 0
  %151 = vmatpush.bf16.msra.mxu0 0
  %152 = vmatpush.bf16.msra.mxu0 0
  %153 = vmatpush.bf16.msra.mxu0 0
  %154 = vmatpush.bf16.msra.mxu0 0
  %155 = vmatpush.bf16.msra.mxu0 %v131
  %156 = vmatpush.bf16.msra.mxu0 %v130
  %157 = vmatmul.bf16.gmra.mxu0 %v65
  %v158 = vpop.f32.mrf.mxu0
  %v159 = vadd.f32 0.0, %v158
  %v160 = vpop.f32.mrf.mxu0
  %v161 = vadd.f32 0.0, %v160
  %162 = vmatmul.bf16.gmra.mxu0 %v68
  %v163 = vpop.f32.mrf.mxu0
  %v164 = vadd.f32 0.0, %v163
  %v165 = vpop.f32.mrf.mxu0
  %v166 = vadd.f32 0.0, %v165
  %167 = vdwg.mxu0
  %v168 = vpack.c.bf16 %v161, %v159
  %v169 = vpack.c.bf16 %v166, %v164
  %v171 = vperm.slane %v148, 0
  %v189 = vunpack.c.l.b16 %v132
  %v190 = vunpack.c.l.b16 %v133
  %v191 = vunpack.c.l.b16 %v134
  %v192 = vunpack.c.l.b16 %v135
  %v193 = vunpack.c.l.b16 %v136
  %v194 = vunpack.c.l.b16 %v137
  %v195 = vunpack.c.l.b16 %v138
  %v196 = vunpack.c.l.b16 %v139
  %v197 = vunpack.c.l.b16 %v140
  %v198 = vunpack.c.l.b16 %v141
  %v199 = vunpack.c.l.b16 %v142
  %v200 = vunpack.c.l.b16 %v143
  %v201 = vunpack.c.l.b16 %v144
  %v202 = vunpack.c.l.b16 %v145
  %v203 = vunpack.c.l.b16 %v146
  %v204 = vunpack.c.l.b16 %v147
  %v205 = vpack.c.b16 %v190, %v189
  %v206 = vpack.c.b16 %v192, %v191
  %v207 = vpack.c.b16 %v194, %v193
  %v208 = vpack.c.b16 %v196, %v195
  %v209 = vpack.c.b16 %v198, %v197
  %v210 = vpack.c.b16 %v200, %v199
  %v211 = vpack.c.b16 %v202, %v201
  %v212 = vpack.c.b16 %v204, %v203
  %221 = vmatpush.bf16.msra.mxu0 %v212
  %222 = vmatpush.bf16.msra.mxu0 %v211
  %223 = vmatpush.bf16.msra.mxu0 %v210
  %224 = vmatpush.bf16.msra.mxu0 %v209
  %225 = vmatpush.bf16.msra.mxu0 %v208
  %226 = vmatpush.bf16.msra.mxu0 %v207
  %227 = vmatpush.bf16.msra.mxu0 %v206
  %228 = vmatpush.bf16.msra.mxu0 %v205
  %229 = vmatmul.bf16.gmra.mxu0 %v168
  %v230 = vpop.f32.mrf.mxu0
  %v231 = vadd.f32 %v171, %v230
  %v232 = vpop.f32.mrf.mxu0
  %v233 = vadd.f32 %v171, %v232
  %234 = vmatmul.bf16.gmra.mxu0 %v169
  %v235 = vpop.f32.mrf.mxu0
  %v236 = vadd.f32 %v171, %v235
  %v237 = vpop.f32.mrf.mxu0
  %v238 = vadd.f32 %v171, %v237
  %239 = vdwg.mxu0
  %v240 = vmax.f32 %v231, 0.0
  %v241 = vmax.f32 %v233, 0.0
  %v242 = vmax.f32 %v236, 0.0
  %v243 = vmax.f32 %v238, 0.0
  %v244 = vpack.c.bf16 %v241, %v240
  %v245 = vpack.c.bf16 %v243, %v242
  %v246 = vld [vmem:[%s6] sm:$0xf]
  %v247 = vld [vmem:[%s6 + $0x4] sm:$0xf]
  %v248 = vld [vmem:[%s6 + $0x8] sm:$0xf]
  %v249 = vld [vmem:[%s6 + $0xc] sm:$0xf]
  %v250 = vld [vmem:[%s6 + $0x10] sm:$0xf]
  %v251 = vld [vmem:[%s6 + $0x14] sm:$0xf]
  %v252 = vld [vmem:[%s6 + $0x18] sm:$0xf]
  %v253 = vld [vmem:[%s6 + $0x1c] sm:$0xf]
  %v254 = vld [vmem:[%s6 + $0x20] sm:$0xf]
  %v255 = vld [vmem:[%s6 + $0x24] sm:$0xf]
  %v256 = vld [vmem:[%s6 + $0x28] sm:$0xf]
  %v257 = vld [vmem:[%s6 + $0x2c] sm:$0xf]
  %v258 = vld [vmem:[%s6 + $0x30] sm:$0xf]
  %v259 = vld [vmem:[%s6 + $0x34] sm:$0xf]
  %v260 = vld [vmem:[%s6 + $0x38] sm:$0xf]
  %v261 = vld [vmem:[%s6 + $0x3c] sm:$0xf]
  %v262 = vld [vmem:[%s7] sm:$0x1]
  %v279 = vunpack.c.l.b16 %v246
  %v280 = vunpack.c.l.b16 %v247
  %v281 = vunpack.c.l.b16 %v248
  %v282 = vunpack.c.l.b16 %v249
  %v283 = vunpack.c.l.b16 %v250
  %v284 = vunpack.c.l.b16 %v251
  %v285 = vunpack.c.l.b16 %v252
  %v286 = vunpack.c.l.b16 %v253
  %v287 = vunpack.c.l.b16 %v254
  %v288 = vunpack.c.l.b16 %v255
  %v289 = vunpack.c.l.b16 %v256
  %v290 = vunpack.c.l.b16 %v257
  %v291 = vunpack.c.l.b16 %v258
  %v292 = vunpack.c.l.b16 %v259
  %v293 = vunpack.c.l.b16 %v260
  %v294 = vunpack.c.l.b16 %v261
  %v295 = vpack.c.b16 %v280, %v279
  %v296 = vpack.c.b16 %v282, %v281
  %v297 = vpack.c.b16 %v284, %v283
  %v298 = vpack.c.b16 %v286, %v285
  %v299 = vpack.c.b16 %v288, %v287
  %v300 = vpack.c.b16 %v290, %v289
  %v301 = vpack.c.b16 %v292, %v291
  %v302 = vpack.c.b16 %v294, %v293
  %311 = vmatpush.bf16.msra.mxu0 %v302
  %312 = vmatpush.bf16.msra.mxu0 %v301
  %313 = vmatpush.bf16.msra.mxu0 %v300
  %314 = vmatpush.bf16.msra.mxu0 %v299
  %315 = vmatpush.bf16.msra.mxu0 %v298
  %316 = vmatpush.bf16.msra.mxu0 %v297
  %317 = vmatpush.bf16.msra.mxu0 %v296
  %318 = vmatpush.bf16.msra.mxu0 %v295
  %319 = vmatmul.bf16.gmra.mxu0 %v244
  %v320 = vpop.f32.mrf.mxu0
  %v321 = vadd.f32 0.0, %v320
  %v322 = vpop.f32.mrf.mxu0
  %v323 = vadd.f32 0.0, %v322
  %324 = vmatmul.bf16.gmra.mxu0 %v245
  %v325 = vpop.f32.mrf.mxu0
  %v326 = vadd.f32 0.0, %v325
  %v327 = vpop.f32.mrf.mxu0
  %v328 = vadd.f32 0.0, %v327
  %329 = vdwg.mxu0
  %v330 = vpack.c.bf16 %v323, %v321
  %v331 = vpack.c.bf16 %v328, %v326
  %v333 = vperm.slane %v262, 0
  %335 = vmatpush.bf16.msra.mxu0 0
  %336 = vmatpush.bf16.msra.mxu0 0
  %337 = vmatpush.bf16.msra.mxu0 0
  %338 = vmatpush.bf16.msra.mxu0 0
  %339 = vmatpush.bf16.msra.mxu0 0
  %340 = vmatpush.bf16.msra.mxu0 0
  %341 = vmatpush.bf16.msra.mxu0 %v331
  %342 = vmatpush.bf16.msra.mxu0 %v330
  %343 = vmatmul.bf16.gmra.mxu0 %v65
  %v344 = vpop.f32.mrf.mxu0
  %v345 = vadd.f32 %v333, %v344
  %v346 = vpop.f32.mrf.mxu0
  %v347 = vadd.f32 %v333, %v346
  %348 = vmatmul.bf16.gmra.mxu0 %v68
  %v349 = vpop.f32.mrf.mxu0
  %v350 = vadd.f32 %v333, %v349
  %v351 = vpop.f32.mrf.mxu0
  %v352 = vadd.f32 %v333, %v351
  %353 = vdwg.mxu0
  %354 = vst [vmem:[%s8] sm:$0xff] %v345
  %355 = vst [vmem:[%s8 + $0x8] sm:$0xff] %v347
  %356 = vst [vmem:[%s8 + $0x10] sm:$0xff] %v350
  %357 = vst [vmem:[%s8 + $0x18] sm:$0xff] %v352
  // Predicated region
  $region34: #{gcn_forward.1} parent=0 // pred_check
    _
  $region35: #{gcn_forward.1} parent=0 // pred_check_branch
    %359 = sbr.rel (0) target = $region37
  $region36: #{gcn_forward.1} parent=0 // pred_region
    _
  $region37: #{gcn_forward.1} parent=0 // pred_fallthru
    _
  // Predicated region
  $region38: #{gcn_forward.1} parent=0 // pred_check
    _
  $region39: #{gcn_forward.1} parent=0 // pred_check_branch
    %361 = sbr.rel (0) target = $region41
  $region40: #{gcn_forward.1} parent=0 // pred_region
    _
  $region41: #{gcn_forward.1} parent=0 // pred_fallthru
    _

</llo_original>
